<compile_context>
chip_gen: v7x
topology: tpu7x:2x2x1
jax: 0.10.0
libtpu: 0.0.40
codegen_flags: <defaults>
</compile_context>

<pallas_src>
import jax
import jax.numpy as jnp
from jax.experimental import pallas as pl
from jax.experimental.pallas import tpu as pltpu


_VMEM_LIMIT = 64 * 1024 * 1024  # explicit scoped-VMEM limit, valid on v5e/v6e/v7x


def _round_up(x, m):
    return ((x + m - 1) // m) * m


def _pad2(x, rows, cols):
    return jnp.pad(x, ((0, rows - x.shape[0]), (0, cols - x.shape[1])))


# ---------------------------------------------------------------------------
# Kernel 1: layer 1 (weights already applied in the wrapper, transform-first):
#   o[i] = relu( A[i, :] @ h + b )
# ---------------------------------------------------------------------------
def _gcn_agg_kernel(a_ref, h_ref, b_ref, o_ref):
    agg = jnp.dot(a_ref[...], h_ref[...], preferred_element_type=jnp.float32)
    o_ref[...] = jnp.maximum(agg + b_ref[...], 0.0).astype(o_ref.dtype)


def _gcn_agg(a, h, b, tm):
    n_pad, f_in = h.shape
    f_out = b.shape[1]
    return pl.pallas_call(
        _gcn_agg_kernel,
        out_shape=jax.ShapeDtypeStruct((n_pad, f_out), jnp.bfloat16),
        grid=(n_pad // tm,),
        in_specs=[
            pl.BlockSpec((tm, n_pad), lambda i: (i, 0)),    # A row panel (streamed)
            pl.BlockSpec((n_pad, f_in), lambda i: (0, 0)),  # h resident (DMA'd once)
            pl.BlockSpec((1, f_out), lambda i: (0, 0)),     # bias (f32)
        ],
        out_specs=pl.BlockSpec((tm, f_out), lambda i: (i, 0)),
        compiler_params=pltpu.CompilerParams(
            dimension_semantics=("parallel",),
            vmem_limit_bytes=_VMEM_LIMIT),
    )(a, h, b)


# ---------------------------------------------------------------------------
# Kernel 2: generic GCN layer, aggregate-first:
#   o[i] = relu( (A[i, :] @ h) @ W + b )
# ---------------------------------------------------------------------------
def _gcn_layer_kernel(a_ref, h_ref, w_ref, b_ref, o_ref):
    agg = jnp.dot(a_ref[...], h_ref[...], preferred_element_type=jnp.float32)
    out = jnp.dot(agg.astype(w_ref.dtype), w_ref[...],
                  preferred_element_type=jnp.float32) + b_ref[...]
    o_ref[...] = jnp.maximum(out, 0.0).astype(o_ref.dtype)


def _gcn_layer(a, h, w, b, tm):
    n_pad, f_in = h.shape
    f_out = w.shape[1]
    return pl.pallas_call(
        _gcn_layer_kernel,
        out_shape=jax.ShapeDtypeStruct((n_pad, f_out), jnp.bfloat16),
        grid=(n_pad // tm,),
        in_specs=[
            pl.BlockSpec((tm, n_pad), lambda i: (i, 0)),    # A row panel (streamed)
            pl.BlockSpec((n_pad, f_in), lambda i: (0, 0)),  # h resident
            pl.BlockSpec((f_in, f_out), lambda i: (0, 0)),  # W
            pl.BlockSpec((1, f_out), lambda i: (0, 0)),     # b (f32)
        ],
        out_specs=pl.BlockSpec((tm, f_out), lambda i: (i, 0)),
        compiler_params=pltpu.CompilerParams(
            dimension_semantics=("parallel",),
            vmem_limit_bytes=_VMEM_LIMIT),
    )(a, h, w, b)


# ---------------------------------------------------------------------------
# Kernel 3: layer 3 fused with per-row-tile partial mean-pool (row axis stays
# parallel: each tile writes its own partial, no shared accumulator).
#   h3[i]      = relu( (A[i, :] @ h2) @ W3 + b3 )        (never hits HBM)
#   partial[i] = P[:, i] @ h3[i]
# ---------------------------------------------------------------------------
def _gcn_pool_partial_kernel(a_ref, h_ref, p_ref, w_ref, b_ref, part_ref):
    agg = jnp.dot(a_ref[...], h_ref[...], preferred_element_type=jnp.float32)
    h3 = jnp.maximum(
        jnp.dot(agg.astype(w_ref.dtype), w_ref[...],
                preferred_element_type=jnp.float32) + b_ref[...],
        0.0)
    part = jnp.dot(p_ref[...], h3.astype(p_ref.dtype),
                   preferred_element_type=jnp.float32)
    part_ref[...] = part[None]


def _gcn_pool_partial(a, h, p, w, b, tm):
    n_pad, f_in = h.shape
    f_out = w.shape[1]
    g_pad = p.shape[0]
    n_tiles = n_pad // tm
    return pl.pallas_call(
        _gcn_pool_partial_kernel,
        out_shape=jax.ShapeDtypeStruct((n_tiles, g_pad, f_out), jnp.float32),
        grid=(n_tiles,),
        in_specs=[
            pl.BlockSpec((tm, n_pad), lambda i: (i, 0)),    # A row panel
            pl.BlockSpec((n_pad, f_in), lambda i: (0, 0)),  # h2 resident
            pl.BlockSpec((g_pad, tm), lambda i: (0, i)),    # P columns for this tile
            pl.BlockSpec((f_in, f_out), lambda i: (0, 0)),  # W3
            pl.BlockSpec((1, f_out), lambda i: (0, 0)),     # b3 (f32)
        ],
        out_specs=pl.BlockSpec((1, g_pad, f_out), lambda i: (i, 0, 0)),
        compiler_params=pltpu.CompilerParams(
            dimension_semantics=("parallel",),
            vmem_limit_bytes=_VMEM_LIMIT),
    )(a, h, p, w, b)


# ---------------------------------------------------------------------------
# Kernel 4: sum the per-tile partial pools and apply the output Linear.
#   out = (sum_i partial[i]) @ Wo + bo
# Tiny (G_pad = 8 rows); whole arrays live in VMEM, single kernel invocation.
# ---------------------------------------------------------------------------
def _pool_out_kernel(part_ref, wo_ref, bo_ref, o_ref):
    pooled = jnp.sum(part_ref[...], axis=0)                 # [G_pad, H3] f32
    out = jnp.dot(pooled.astype(wo_ref.dtype), wo_ref[...],
                  preferred_element_type=jnp.float32) + bo_ref[...]
    o_ref[...] = out


def _pool_out(partials, wo, bo):
    g_pad = partials.shape[1]
    d_out = wo.shape[1]
    return pl.pallas_call(
        _pool_out_kernel,
        out_shape=jax.ShapeDtypeStruct((g_pad, d_out), jnp.float32),
        compiler_params=pltpu.CompilerParams(vmem_limit_bytes=_VMEM_LIMIT),
    )(partials, wo, bo)


# ---------------------------------------------------------------------------
# One-time preparation (padding + bf16 casts hoisted out of the forward pass).
# ---------------------------------------------------------------------------
def _vmem_estimate(n_pad, tm, f_in, f_out, g_pad):
    bf2, f4 = 2, 4
    a_panel = 2 * tm * n_pad * bf2          # streamed A panel, double-buffered
    h_res = 2 * n_pad * f_in * bf2          # resident h (counted 2x, conservative)
    w = 2 * f_in * f_out * bf2
    out_b = 2 * tm * f_out * bf2
    pool = 2 * g_pad * (f_out + tm) * f4
    return a_panel + h_res + w + out_b + pool


def prepare(a_hat, pool_mat, params, *, tm, num_graphs, output_dim):
    (w1, b1), (w2, b2), (w3, b3), (wo, bo) = params
    n = a_hat.shape[0]
    n_pad = _round_up(n, tm)
    g_pad = max(_round_up(pool_mat.shape[0], 8), 8)

    h1p = _round_up(w1.shape[1], 128)
    h2p = _round_up(w2.shape[1], 128)
    h3p = _round_up(w3.shape[1], 128)
    dop = _round_up(wo.shape[1], 128)

    # VMEM budget check for the resident-h design.
    f_max = max(h1p, h2p, h3p)
    est = _vmem_estimate(n_pad, tm, f_max, f_max, g_pad)
    assert est < 0.8 * _VMEM_LIMIT, (
        f"resident-h VMEM estimate {est/2**20:.1f} MiB exceeds budget; "
        "use the block-sparse / k-tiled path (see TODO)")

    bf16 = jnp.bfloat16
    # Padded nodes have zero adjacency columns and zero pool-matrix columns, so
    # they never influence real nodes or the pooled output.
    prep = dict(
        tm=tm, n_pad=n_pad, g_pad=g_pad,
        num_graphs=num_graphs, output_dim=output_dim,
        a=_pad2(a_hat, n_pad, n_pad).astype(bf16),
        p=_pad2(pool_mat, g_pad, n_pad).astype(bf16),
        w1=w1.astype(jnp.float32),                 # used in XLA (transform-first)
        b1=_pad2(b1, 1, h1p),                      # biases stay f32
        w2=_pad2(w2, h1p, h2p).astype(bf16),
        b2=_pad2(b2, 1, h2p),
        w3=_pad2(w3, h2p, h3p).astype(bf16),
        b3=_pad2(b3, 1, h3p),
        wo=_pad2(wo, h3p, dop).astype(bf16),
        bo=_pad2(bo, 1, dop),
    )
    return prep


def graph_encoder_forward(prep, x):
    tm, n_pad = prep["tm"], prep["n_pad"]
    h1p = prep["b1"].shape[1]

    # Layer 1, transform-first: tiny input_dim matmul done in XLA, then the
    # kernel only aggregates (A @ h1_pre) + b1, relu.
    h1_pre = x.astype(jnp.float32) @ prep["w1"]                     # [N, H1] f32
    h1_pre = _pad2(h1_pre, n_pad, h1p).astype(jnp.bfloat16)         # [N_pad, H1p]
    h = _gcn_agg(prep["a"], h1_pre, prep["b1"], tm)                 # [N_pad, H1p] bf16

    # Layer 2: relu((A @ h) @ W2 + b2)
    h = _gcn_layer(prep["a"], h, prep["w2"], prep["b2"], tm)        # [N_pad, H2p] bf16

    # Layer 3 fused with per-tile partial mean-pool (row-parallel).
    partials = _gcn_pool_partial(prep["a"], h, prep["p"],
                                 prep["w3"], prep["b3"], tm)        # [tiles, Gp, H3p] f32

    # Sum partials + output Linear.
    out = _pool_out(partials, prep["wo"], prep["bo"])               # [Gp, Dop] f32
    return out[:prep["num_graphs"], :prep["output_dim"]]


# ---------------------------------------------------------------------------
# Plain-JAX glue: dense normalized adjacency / pooling matrix, parameter init
# (xavier_uniform weights, zero biases — matches the PyTorch module), reference.
# ---------------------------------------------------------------------------
def build_norm_adj(edge_index, num_nodes):
    # Adds self-loops unconditionally (edge_index is assumed to have none).
    src, dst = edge_index[0], edge_index[1]
    loop = jnp.arange(num_nodes, dtype=edge_index.dtype)
    src = jnp.concatenate([src, loop])
    dst = jnp.concatenate([dst, loop])
    adj = jnp.zeros((num_nodes, num_nodes), jnp.float32).at[dst, src].add(1.0)
    deg = adj.sum(axis=1)
    dinv = jnp.where(deg > 0, 1.0 / jnp.sqrt(deg), 0.0)
    return dinv[:, None] * adj * dinv[None, :]


def build_pool_matrix(batch, num_graphs):
    onehot = (batch[None, :] == jnp.arange(num_graphs)[:, None]).astype(jnp.float32)
    counts = onehot.sum(axis=1, keepdims=True)
    return onehot / jnp.maximum(counts, 1.0)


def xavier_uniform(key, fan_in, fan_out):
    bound = (6.0 / (fan_in + fan_out)) ** 0.5
    # stored as [in, out] so kernels compute h @ W (== h @ weight.T in torch terms)
    return jax.random.uniform(key, (fan_in, fan_out), jnp.float32, -bound, bound)


def init_params(key, input_dim, hidden_dims, output_dim):
    dims = [input_dim] + list(hidden_dims)
    params = []
    for i in range(len(hidden_dims)):
        key, sub = jax.random.split(key)
        w = xavier_uniform(sub, dims[i], dims[i + 1])
        b = jnp.zeros((1, dims[i + 1]), jnp.float32)
        params.append((w, b))
    key, sub = jax.random.split(key)
    wo = xavier_uniform(sub, hidden_dims[-1], output_dim)
    bo = jnp.zeros((1, output_dim), jnp.float32)
    params.append((wo, bo))
    return params


def reference_forward(a_hat, pool_mat, x, params):
    (w1, b1), (w2, b2), (w3, b3), (wo, bo) = params
    h = x
    for w, b in ((w1, b1), (w2, b2), (w3, b3)):
        h = jnp.maximum(a_hat @ (h @ w) + b, 0.0)
    return (pool_mat @ h) @ wo + bo


if __name__ == "__main__":
    key = jax.random.PRNGKey(0)

    # Small shapes consistent with the module's forward:
    #   x: [N, input_dim] node features, edge_index: [2, E], batch: [N]
    num_nodes = 512          # 2 chain graphs of 256 nodes each
    num_graphs = 2
    input_dim = 8
    hidden_dims = [128, 256, 256]   # lane-dense (128-multiple) hidden widths
    output_dim = 256
    tm = 256                 # row-panel tile (2 row tiles here; go 512 at scale)

    key, kx = jax.random.split(key)
    x = jax.random.normal(kx, (num_nodes, input_dim), jnp.float32)

    # chain graphs, undirected (edges in both directions)
    edges = []
    per = num_nodes // num_graphs
    for gidx in range(num_graphs):
        base = gidx * per
        for i in range(per - 1):
            edges.append((base + i, base + i + 1))
            edges.append((base + i + 1, base + i))
    edge_index = jnp.array(edges, dtype=jnp.int32).T                   # [2, E]
    batch = jnp.repeat(jnp.arange(num_graphs, dtype=jnp.int32), per)   # [N]

    a_hat = build_norm_adj(edge_index, num_nodes)                      # [N, N]
    pool_mat = build_pool_matrix(batch, num_graphs)                    # [G, N]
    params = init_params(key, input_dim, hidden_dims, output_dim)

    # One-time setup (padding / bf16 casts hoisted out of the forward).
    prep = prepare(a_hat, pool_mat, params, tm=tm,
                   num_graphs=num_graphs, output_dim=output_dim)

    out = graph_encoder_forward(prep, x)
    jax.block_until_ready(out)

    assert out.shape == (num_graphs, output_dim)
    assert jnp.all(jnp.isfinite(out))

    # correctness vs f32 plain-JAX reference (bf16 operands -> loose tolerance)
    ref = reference_forward(a_hat, pool_mat, x, params)
    rel_err = float(jnp.max(jnp.abs(out - ref)) / (jnp.max(jnp.abs(ref)) + 1e-6))
    assert rel_err < 0.1, f"relative error too large: {rel_err}"

    print("KERNEL_OK")
</pallas_src>

<mosaic_0001>
module attributes {stable_mosaic.version = 11 : i64} {
  func.func @_gcn_agg_kernel(%arg0: i32, %arg1: memref<256x512xbf16, #tpu.memory_space<vmem>>, %arg2: memref<512x128xbf16, #tpu.memory_space<vmem>>, %arg3: memref<1x128xf32, #tpu.memory_space<vmem>>, %arg4: memref<256x128xbf16, #tpu.memory_space<vmem>>) attributes {dimension_semantics = [#tpu.dimension_semantics<parallel>], iteration_bounds = array<i64: 2>, scalar_prefetch = 0 : i64, scratch_operands = 0 : i64, tpu.core_type = #tpu.core_type<tc>, window_params = [{transform_indices = @transform_0, window_bounds = array<i64: 256, 512>}, {pipeline_mode = #tpu.pipeline_mode<synchronous>, transform_indices = @transform_1, window_bounds = array<i64: 512, 128>}, {pipeline_mode = #tpu.pipeline_mode<synchronous>, transform_indices = @transform_2, window_bounds = array<i64: 1, 128>}, {transform_indices = @transform_3, window_bounds = array<i64: 256, 128>}]} {
    %c0 = arith.constant 0 : index
    %c0_0 = arith.constant 0 : index
    %0 = vector.load %arg1[%c0, %c0_0] : memref<256x512xbf16, #tpu.memory_space<vmem>>, vector<256x512xbf16>
    %c0_1 = arith.constant 0 : index
    %c0_2 = arith.constant 0 : index
    %1 = vector.load %arg2[%c0_1, %c0_2] : memref<512x128xbf16, #tpu.memory_space<vmem>>, vector<512x128xbf16>
    %cst = arith.constant dense<0.000000e+00> : vector<256x128xf32>
    %2 = tpu.matmul %0, %1, %cst {dimension_numbers = #tpu.dot_dimension_numbers<[1], [0], [0], [1], [0, 0, 1, 1], [], []>} : vector<256x512xbf16>, vector<512x128xbf16>, vector<256x128xf32> -> vector<256x128xf32>
    %c0_3 = arith.constant 0 : index
    %c0_4 = arith.constant 0 : index
    %3 = vector.load %arg3[%c0_3, %c0_4] : memref<1x128xf32, #tpu.memory_space<vmem>>, vector<1x128xf32>
    %4 = vector.broadcast %3 : vector<1x128xf32> to vector<256x128xf32>
    %5 = arith.addf %2, %4 : vector<256x128xf32>
    %cst_5 = arith.constant 0.000000e+00 : f32
    %6 = vector.broadcast %cst_5 : f32 to vector<256x128xf32>
    %7 = arith.maximumf %5, %6 : vector<256x128xf32>
    %8 = arith.truncf %7 : vector<256x128xf32> to vector<256x128xbf16>
    %c0_6 = arith.constant 0 : index
    %c0_7 = arith.constant 0 : index
    %9 = vector.load %arg4[%c0_6, %c0_7] : memref<256x128xbf16, #tpu.memory_space<vmem>>, vector<256x128xbf16>
    tpu.vector_store %arg4[%c0_6, %c0_7], %8 {strides = array<i32>} : memref<256x128xbf16, #tpu.memory_space<vmem>>, vector<256x128xbf16>,
    return
  }
  func.func @transform_0(%arg0: i32) -> (i32, i32) {
    %c0_i32 = arith.constant 0 : i32
    %c0_i32_0 = arith.constant 0 : i32
    return %arg0, %c0_i32 : i32, i32
  }
  func.func @transform_1(%arg0: i32) -> (i32, i32) {
    %c0_i32 = arith.constant 0 : i32
    %c0_i32_0 = arith.constant 0 : i32
    %c0_i32_1 = arith.constant 0 : i32
    return %c0_i32, %c0_i32_0 : i32, i32
  }
  func.func @transform_2(%arg0: i32) -> (i32, i32) {
    %c0_i32 = arith.constant 0 : i32
    %c0_i32_0 = arith.constant 0 : i32
    %c0_i32_1 = arith.constant 0 : i32
    return %c0_i32, %c0_i32_0 : i32, i32
  }
  func.func @transform_3(%arg0: i32) -> (i32, i32) {
    %c0_i32 = arith.constant 0 : i32
    %c0_i32_0 = arith.constant 0 : i32
    return %arg0, %c0_i32 : i32, i32
  }
}

</mosaic_0001>

<llo_original>
// kernel: tpu_custom_call.1
$region0: #{tpu_custom_call.1}
  #allocation0 [shape = 'u32[]', space=smem, size = 0x4, offset = 0x4, fixed_abs, tag = 'smem constant byte address 0x4 - core index']
  #allocation1 [shape = 'u32[144,128]{1,0:T(1,128)}', space=vmem, size = 0x12000, scoped, tag = 'internal scratch']
  %s0 = inlined_call_operand.hbm [shape: bf16[512,512], index: 0, kind: input, shape index: {}]
  %s1 = inlined_call_operand.hbm [shape: bf16[512,128], index: 1, kind: input, shape index: {}]
  %s2 = inlined_call_operand.hbm [shape: f32[1,128], index: 2, kind: input, shape index: {}]
  %s3 = inlined_call_operand.hbm [shape: bf16[512,128], index: 3, kind: output, shape index: {}]
  %s4 = sld [smem:[#allocation0]]
  $region57: #{tpu_custom_call.1} parent=0
    _
  %s6 = ssub.s32 1, %s4
  %s7 = scalar_select 0, %s6, %s4
  $region1: #{tpu_custom_call.1} parent=0
    #allocation2 [shape = 'u8[524288]{0}', space=vmem, size = 0x80000, scoped, tag = 'input window, operand 0']
    #allocation3 [shape = 's32[2]{0}', space=sflag, size = 0x8, scoped, tag = 'scoped memory for tpu_custom_call.1']
    #allocation4 [shape = 's32[2]{0}', space=sflag, size = 0x8, scoped, tag = 'scoped memory for tpu_custom_call.1']
    #allocation5 [shape = 'u8[131072]{0}', space=vmem, size = 0x20000, scoped, tag = 'input window, operand 1, single buffered']
    #allocation6 [shape = 's32[1]{0}', space=sflag, size = 0x4, scoped, tag = 'scoped memory for tpu_custom_call.1']
    #allocation7 [shape = 'u8[512]{0}', space=vmem, size = 0x400, scoped, tag = 'input window, operand 2, single buffered']
    #allocation8 [shape = 'u8[131072]{0}', space=vmem, size = 0x20000, scoped, tag = 'output window, operand 0']
    %8 = vsyncpa [#allocation3], 0
    %s9 = scalar_lea.sflag [#allocation3], 1
    %10 = vsyncpa %s9, 0
    %11 = vsyncpa [#allocation6], 0
    %12 = vsyncpa [#allocation4], 0
    %s13 = scalar_lea.sflag [#allocation4], 1
    %14 = vsyncpa %s13, 0
    loop: start=0, step=1, limit=4
    $region2: #{tpu_custom_call.1} parent=1 // loop_pre_header
      _
    $region3: #{tpu_custom_call.1} parent=1 // loop_header
      %s16 = sphi 0, %s20
      %p17 = scmp.ge.s32.totalorder %s16, 4
      %s26 = sphi 0, %s28
      %s29 = sphi 0, %s26
      %s30 = sphi 0, %s29
      %s46 = sphi 0, %s30
      %s50 = sphi 0, %s50
      %s52 = sphi 0, %s50
      %s53 = sphi 0, %s52
      %s67 = sphi 0, %s53
      %s71 = sphi 0, %s71
      %s73 = sphi 0, %s71
      %s74 = sphi 0, %s73
      %s88 = sphi 0, %s74
      %s94 = sphi 0, %s96
      %s97 = sphi 0, %s94
      %s98 = sphi 0, %s97
      %s114 = sphi 0, %s98
    $region4: #{tpu_custom_call.1} parent=1 // loop_header_branch
      %19 = sbr.rel (%p17) target = $region8
    $region5: #{tpu_custom_call.1} parent=1 // loop_body
      %s21 = ssub.s32 %s16, 1
      %s22 = ssub.s32 %s16, 2
      %s23 = sadd.s32 %s16, 1
      %s24 = ssub.s32 %s16, %s23
      %p25 = scmp.eq.s32.totalorder %s24, 0
      %s27 = sadd.s32 %s26, 1
      %s28 = scalar_select %p25, %s26, %s27
      %p31 = pneg %p25
      %p32 = scmp.eq.s32.totalorder %s16, 1
      %p33 = por %p31, %p32
      %p34 = scmp.ne.s32.totalorder %s26, %s29
      %p35 = scmp.eq.s32.totalorder %s16, 0
      %p36 = por %p34, %p35
      %p37 = scmp.ne.s32.totalorder %s26, %s29
      %p38 = scmp.eq.s32.totalorder %s21, 1
      %p39 = por %p37, %p38
      %p40 = scmp.ne.s32.totalorder %s29, %s30
      %p41 = scmp.eq.s32.totalorder %s21, 0
      %p42 = por %p40, %p41
      %p43 = scmp.ne.s32.totalorder %s29, %s30
      %p44 = scmp.eq.s32.totalorder %s22, 1
      %p45 = por %p43, %p44
      %p47 = scmp.ne.s32.totalorder %s30, %s46
      %p48 = scmp.eq.s32.totalorder %s22, 0
      %p49 = por %p47, %p48
      %s51 = sadd.s32 %s50, 1
      %p54 = scmp.eq.s32.totalorder %s16, 1
      %p55 = scmp.ne.s32.totalorder %s50, %s52
      %p56 = scmp.eq.s32.totalorder %s16, 0
      %p57 = por %p55, %p56
      %p58 = scmp.ne.s32.totalorder %s50, %s52
      %p59 = scmp.eq.s32.totalorder %s21, 1
      %p60 = por %p58, %p59
      %p61 = scmp.ne.s32.totalorder %s52, %s53
      %p62 = scmp.eq.s32.totalorder %s21, 0
      %p63 = por %p61, %p62
      %p64 = scmp.ne.s32.totalorder %s52, %s53
      %p65 = scmp.eq.s32.totalorder %s22, 1
      %p66 = por %p64, %p65
      %p68 = scmp.ne.s32.totalorder %s53, %s67
      %p69 = scmp.eq.s32.totalorder %s22, 0
      %p70 = por %p68, %p69
      %s72 = sadd.s32 %s71, 1
      %p75 = scmp.eq.s32.totalorder %s16, 1
      %p76 = scmp.ne.s32.totalorder %s71, %s73
      %p77 = scmp.eq.s32.totalorder %s16, 0
      %p78 = por %p76, %p77
      %p79 = scmp.ne.s32.totalorder %s71, %s73
      %p80 = scmp.eq.s32.totalorder %s21, 1
      %p81 = por %p79, %p80
      %p82 = scmp.ne.s32.totalorder %s73, %s74
      %p83 = scmp.eq.s32.totalorder %s21, 0
      %p84 = por %p82, %p83
      %p85 = scmp.ne.s32.totalorder %s73, %s74
      %p86 = scmp.eq.s32.totalorder %s22, 1
      %p87 = por %p85, %p86
      %p89 = scmp.ne.s32.totalorder %s74, %s88
      %p90 = scmp.eq.s32.totalorder %s22, 0
      %p91 = por %p89, %p90
      %s92 = ssub.s32 %s16, %s23
      %p93 = scmp.eq.s32.totalorder %s92, 0
      %s95 = sadd.s32 %s94, 1
      %s96 = scalar_select %p93, %s94, %s95
      %p99 = pneg %p93
      %p100 = scmp.eq.s32.totalorder %s16, 1
      %p101 = por %p99, %p100
      %p102 = scmp.ne.s32.totalorder %s94, %s97
      %p103 = scmp.eq.s32.totalorder %s16, 0
      %p104 = por %p102, %p103
      %p105 = scmp.ne.s32.totalorder %s94, %s97
      %p106 = scmp.eq.s32.totalorder %s21, 1
      %p107 = por %p105, %p106
      %p108 = scmp.ne.s32.totalorder %s97, %s98
      %p109 = scmp.eq.s32.totalorder %s21, 0
      %p110 = por %p108, %p109
      %p111 = scmp.ne.s32.totalorder %s97, %s98
      %p112 = scmp.eq.s32.totalorder %s22, 1
      %p113 = por %p111, %p112
      %p115 = scmp.ne.s32.totalorder %s98, %s114
      %p116 = scmp.eq.s32.totalorder %s22, 0
      %p117 = por %p115, %p116
      %p118 = scmp.le.s32.totalorder 1, %s16
      %p119 = scmp.lt.s32.totalorder %s16, 3
      %p120 = pnand %p118, %p119
      %p121 = pneg %p120
      // Predicated region
      $region9: #{tpu_custom_call.1} parent=5 // pred_check
        _
      $region10: #{tpu_custom_call.1} parent=5 // pred_check_branch
        %123 = sbr.rel (%p120) target = $region12
      $region11: #{tpu_custom_call.1} parent=5 // pred_region
        %s124 = ssub.s32 %s16, 1
        // Predicated region
        $region13: #{tpu_custom_call.1} parent=11 // pred_check
          %p125 = pneg %p63
        $region14: #{tpu_custom_call.1} parent=11 // pred_check_branch
          %127 = sbr.rel (%p125) target = $region16
        $region15: #{tpu_custom_call.1} parent=11 // pred_region
          %s129 = ssub.s32 4096, 4096
          %130 = vsyncadd [#allocation6], %s129
          %s131 = sshll.u32 [#allocation5], 4
          %s132 = int_to_ptr.vmem [resolvable:$true] %s131
          %137 = dma.hbm_to_vmem [thread:$0]  %s1, 4096, %s132, [#allocation6], 64, 64, 4
        $region16: #{tpu_custom_call.1} parent=11 // pred_fallthru
          _
        // Predicated region
        $region17: #{tpu_custom_call.1} parent=11 // pred_check
          %p138 = pneg %p84
        $region18: #{tpu_custom_call.1} parent=11 // pred_check_branch
          %140 = sbr.rel (%p138) target = $region20
        $region19: #{tpu_custom_call.1} parent=11 // pred_region
          %s142 = ssub.s32 16, 16
          %143 = vsyncadd [#allocation6], %s142
          %s145 = sshll.u32 [#allocation7], 4
          %s146 = int_to_ptr.vmem [resolvable:$true] %s145
          %148 = dma.hbm_to_vmem [thread:$0]  %s2, 16, %s146, [#allocation6]
        $region20: #{tpu_custom_call.1} parent=11 // pred_fallthru
          _
      $region12: #{tpu_custom_call.1} parent=5 // pred_fallthru
        _
      %p149 = scmp.lt.s32.totalorder %s16, 2
      // Predicated region
      $region21: #{tpu_custom_call.1} parent=5 // pred_check
        %p150 = pneg %p149
      $region22: #{tpu_custom_call.1} parent=5 // pred_check_branch
        %152 = sbr.rel (%p150) target = $region24
      $region23: #{tpu_custom_call.1} parent=5 // pred_region
        // Predicated region
        $region25: #{tpu_custom_call.1} parent=23 // pred_check
          %p153 = pneg %p36
        $region26: #{tpu_custom_call.1} parent=23 // pred_check_branch
          %155 = sbr.rel (%p153) target = $region28
        $region27: #{tpu_custom_call.1} parent=23 // pred_region
          %s156 = sand.u32 %s26, 1
          %s157 = scalar_lea.sflag [#allocation3], %s156
          %s158 = sand.u32 %s26, 1
          %s159 = smul.addr %s158, 512
          %s160 = scalar_lea.vmem [#allocation2], %s159
          %s161 = smul.u32 32, %s16
          %s163 = ssub.s32 8192, 8192
          %164 = vsyncadd %s157, %s163
          %s165 = smul.addr %s161, 4
          %s166 = smul.addr %s165, 64
          %s167 = scalar_lea.hbm %s0, %s166
          %s168 = sshll.u32 %s160, 4
          %s169 = int_to_ptr.vmem [resolvable:$true] %s168
          %174 = dma.hbm_to_vmem [thread:$0]  %s167, 8192, %s169, %s157, 256, 256, 16
        $region28: #{tpu_custom_call.1} parent=23 // pred_fallthru
          _
      $region24: #{tpu_custom_call.1} parent=5 // pred_fallthru
        _
      %p175 = scmp.le.s32.totalorder 1, %s16
      %p176 = scmp.lt.s32.totalorder %s16, 3
      %p177 = pnand %p175, %p176
      %p178 = pneg %p177
      // Predicated region
      $region29: #{tpu_custom_call.1} parent=5 // pred_check
        _
      $region30: #{tpu_custom_call.1} parent=5 // pred_check_branch
        %180 = sbr.rel (%p177) target = $region32
      $region31: #{tpu_custom_call.1} parent=5 // pred_region
        %s181 = ssub.s32 %s16, 1
        %s182 = sand.u32 %s29, 1
        %s183 = scalar_lea.sflag [#allocation3], %s182
        %s184 = sand.u32 %s29, 1
        %s185 = smul.addr %s184, 512
        %s186 = scalar_lea.vmem [#allocation2], %s185
        // Predicated region
        $region33: #{tpu_custom_call.1} parent=31 // pred_check
          %p187 = pneg %p42
        $region34: #{tpu_custom_call.1} parent=31 // pred_check_branch
          %189 = sbr.rel (%p187) target = $region36
        $region35: #{tpu_custom_call.1} parent=31 // pred_region
          %190 = dma.done %s183, 8192
        $region36: #{tpu_custom_call.1} parent=31 // pred_fallthru
          _
        // Predicated region
        $region37: #{tpu_custom_call.1} parent=31 // pred_check
          %p191 = pneg %p63
        $region38: #{tpu_custom_call.1} parent=31 // pred_check_branch
          %193 = sbr.rel (%p191) target = $region40
        $region39: #{tpu_custom_call.1} parent=31 // pred_region
          %194 = dma.done [#allocation6], 4096
        $region40: #{tpu_custom_call.1} parent=31 // pred_fallthru
          _
        // Predicated region
        $region41: #{tpu_custom_call.1} parent=31 // pred_check
          %p195 = pneg %p84
        $region42: #{tpu_custom_call.1} parent=31 // pred_check_branch
          %197 = sbr.rel (%p195) target = $region44
        $region43: #{tpu_custom_call.1} parent=31 // pred_region
          %198 = dma.done [#allocation6], 16
        $region44: #{tpu_custom_call.1} parent=31 // pred_fallthru
          _
        %s199 = sand.u32 %s29, 1
        %s200 = scalar_lea.sflag [#allocation3], %s199
        %s201 = sand.u32 %s29, 1
        %s202 = smul.addr %s201, 512
        %s203 = scalar_lea.vmem [#allocation2], %s202
        %p204 = pneg %p42
        %p205 = pneg %p39
        %p206 = pneg %p63
        %p207 = pneg %p60
        %p208 = pneg %p84
        %p209 = pneg %p81
        %p210 = pneg %p110
        %p211 = pneg %p107
        %s212 = sand.u32 %s97, 1
        %s213 = scalar_lea.sflag [#allocation4], %s212
        %s214 = sand.u32 %s97, 1
        %s215 = smul.addr %s214, 128
        %s216 = scalar_lea.vmem [#allocation8], %s215
        %s217 = smul.u32 32, %s21
        %s218 = smul.u32 32, %s21
        %v220 = vld [vmem:[%s186] sm:$0xff]
        %v221 = vld [vmem:[%s186 + $0x8] sm:$0xff]
        %v222 = vld [vmem:[%s186 + $0x10] sm:$0xff]
        %v223 = vld [vmem:[%s186 + $0x18] sm:$0xff]
        %v224 = vld [vmem:[%s186 + $0x20] sm:$0xff]
        %v225 = vld [vmem:[%s186 + $0x28] sm:$0xff]
        %v226 = vld [vmem:[%s186 + $0x30] sm:$0xff]
        %v227 = vld [vmem:[%s186 + $0x38] sm:$0xff]
        %v228 = vld [vmem:[%s186 + $0x40] sm:$0xff]
        %v229 = vld [vmem:[%s186 + $0x48] sm:$0xff]
        %v230 = vld [vmem:[%s186 + $0x50] sm:$0xff]
        %v231 = vld [vmem:[%s186 + $0x58] sm:$0xff]
        %v232 = vld [vmem:[%s186 + $0x60] sm:$0xff]
        %v233 = vld [vmem:[%s186 + $0x68] sm:$0xff]
        %v234 = vld [vmem:[%s186 + $0x70] sm:$0xff]
        %v235 = vld [vmem:[%s186 + $0x78] sm:$0xff]
        %v236 = vld [vmem:[%s186 + $0x80] sm:$0xff]
        %v237 = vld [vmem:[%s186 + $0x88] sm:$0xff]
        %v238 = vld [vmem:[%s186 + $0x90] sm:$0xff]
        %v239 = vld [vmem:[%s186 + $0x98] sm:$0xff]
        %v240 = vld [vmem:[%s186 + $0xa0] sm:$0xff]
        %v241 = vld [vmem:[%s186 + $0xa8] sm:$0xff]
        %v242 = vld [vmem:[%s186 + $0xb0] sm:$0xff]
        %v243 = vld [vmem:[%s186 + $0xb8] sm:$0xff]
        %v244 = vld [vmem:[%s186 + $0xc0] sm:$0xff]
        %v245 = vld [vmem:[%s186 + $0xc8] sm:$0xff]
        %v246 = vld [vmem:[%s186 + $0xd0] sm:$0xff]
        %v247 = vld [vmem:[%s186 + $0xd8] sm:$0xff]
        %v248 = vld [vmem:[%s186 + $0xe0] sm:$0xff]
        %v249 = vld [vmem:[%s186 + $0xe8] sm:$0xff]
        %v250 = vld [vmem:[%s186 + $0xf0] sm:$0xff]
        %v251 = vld [vmem:[%s186 + $0xf8] sm:$0xff]
        %v252 = vld [vmem:[%s186 + $0x100] sm:$0xff]
        %v253 = vld [vmem:[%s186 + $0x108] sm:$0xff]
        %v254 = vld [vmem:[%s186 + $0x110] sm:$0xff]
        %v255 = vld [vmem:[%s186 + $0x118] sm:$0xff]
        %v256 = vld [vmem:[%s186 + $0x120] sm:$0xff]
        %v257 = vld [vmem:[%s186 + $0x128] sm:$0xff]
        %v258 = vld [vmem:[%s186 + $0x130] sm:$0xff]
        %v259 = vld [vmem:[%s186 + $0x138] sm:$0xff]
        %v260 = vld [vmem:[%s186 + $0x140] sm:$0xff]
        %v261 = vld [vmem:[%s186 + $0x148] sm:$0xff]
        %v262 = vld [vmem:[%s186 + $0x150] sm:$0xff]
        %v263 = vld [vmem:[%s186 + $0x158] sm:$0xff]
        %v264 = vld [vmem:[%s186 + $0x160] sm:$0xff]
        %v265 = vld [vmem:[%s186 + $0x168] sm:$0xff]
        %v266 = vld [vmem:[%s186 + $0x170] sm:$0xff]
        %v267 = vld [vmem:[%s186 + $0x178] sm:$0xff]
        %v268 = vld [vmem:[%s186 + $0x180] sm:$0xff]
        %v269 = vld [vmem:[%s186 + $0x188] sm:$0xff]
        %v270 = vld [vmem:[%s186 + $0x190] sm:$0xff]
        %v271 = vld [vmem:[%s186 + $0x198] sm:$0xff]
        %v272 = vld [vmem:[%s186 + $0x1a0] sm:$0xff]
        %v273 = vld [vmem:[%s186 + $0x1a8] sm:$0xff]
        %v274 = vld [vmem:[%s186 + $0x1b0] sm:$0xff]
        %v275 = vld [vmem:[%s186 + $0x1b8] sm:$0xff]
        %v276 = vld [vmem:[%s186 + $0x1c0] sm:$0xff]
        %v277 = vld [vmem:[%s186 + $0x1c8] sm:$0xff]
        %v278 = vld [vmem:[%s186 + $0x1d0] sm:$0xff]
        %v279 = vld [vmem:[%s186 + $0x1d8] sm:$0xff]
        %v280 = vld [vmem:[%s186 + $0x1e0] sm:$0xff]
        %v281 = vld [vmem:[%s186 + $0x1e8] sm:$0xff]
        %v282 = vld [vmem:[%s186 + $0x1f0] sm:$0xff]
        %v283 = vld [vmem:[%s186 + $0x1f8] sm:$0xff]
        %v284 = vld [vmem:[#allocation5] sm:$0xf]
        %v285 = vld [vmem:[#allocation5 + $0x4] sm:$0xf]
        %v286 = vld [vmem:[#allocation5 + $0x8] sm:$0xf]
        %v287 = vld [vmem:[#allocation5 + $0xc] sm:$0xf]
        %v288 = vld [vmem:[#allocation5 + $0x10] sm:$0xf]
        %v289 = vld [vmem:[#allocation5 + $0x14] sm:$0xf]
        %v290 = vld [vmem:[#allocation5 + $0x18] sm:$0xf]
        %v291 = vld [vmem:[#allocation5 + $0x1c] sm:$0xf]
        %v292 = vld [vmem:[#allocation5 + $0x20] sm:$0xf]
        %v293 = vld [vmem:[#allocation5 + $0x24] sm:$0xf]
        %v294 = vld [vmem:[#allocation5 + $0x28] sm:$0xf]
        %v295 = vld [vmem:[#allocation5 + $0x2c] sm:$0xf]
        %v296 = vld [vmem:[#allocation5 + $0x30] sm:$0xf]
        %v297 = vld [vmem:[#allocation5 + $0x34] sm:$0xf]
        %v298 = vld [vmem:[#allocation5 + $0x38] sm:$0xf]
        %v299 = vld [vmem:[#allocation5 + $0x3c] sm:$0xf]
        %v300 = vld [vmem:[#allocation5 + $0x40] sm:$0xf]
        %v301 = vld [vmem:[#allocation5 + $0x44] sm:$0xf]
        %v302 = vld [vmem:[#allocation5 + $0x48] sm:$0xf]
        %v303 = vld [vmem:[#allocation5 + $0x4c] sm:$0xf]
        %v304 = vld [vmem:[#allocation5 + $0x50] sm:$0xf]
        %v305 = vld [vmem:[#allocation5 + $0x54] sm:$0xf]
        %v306 = vld [vmem:[#allocation5 + $0x58] sm:$0xf]
        %v307 = vld [vmem:[#allocation5 + $0x5c] sm:$0xf]
        %v308 = vld [vmem:[#allocation5 + $0x60] sm:$0xf]
        %v309 = vld [vmem:[#allocation5 + $0x64] sm:$0xf]
        %v310 = vld [vmem:[#allocation5 + $0x68] sm:$0xf]
        %v311 = vld [vmem:[#allocation5 + $0x6c] sm:$0xf]
        %v312 = vld [vmem:[#allocation5 + $0x70] sm:$0xf]
        %v313 = vld [vmem:[#allocation5 + $0x74] sm:$0xf]
        %v314 = vld [vmem:[#allocation5 + $0x78] sm:$0xf]
        %v315 = vld [vmem:[#allocation5 + $0x7c] sm:$0xf]
        %v316 = vld [vmem:[#allocation5 + $0x80] sm:$0xf]
        %v317 = vld [vmem:[#allocation5 + $0x84] sm:$0xf]
        %v318 = vld [vmem:[#allocation5 + $0x88] sm:$0xf]
        %v319 = vld [vmem:[#allocation5 + $0x8c] sm:$0xf]
        %v320 = vld [vmem:[#allocation5 + $0x90] sm:$0xf]
        %v321 = vld [vmem:[#allocation5 + $0x94] sm:$0xf]
        %v322 = vld [vmem:[#allocation5 + $0x98] sm:$0xf]
        %v323 = vld [vmem:[#allocation5 + $0x9c] sm:$0xf]
        %v324 = vld [vmem:[#allocation5 + $0xa0] sm:$0xf]
        %v325 = vld [vmem:[#allocation5 + $0xa4] sm:$0xf]
        %v326 = vld [vmem:[#allocation5 + $0xa8] sm:$0xf]
        %v327 = vld [vmem:[#allocation5 + $0xac] sm:$0xf]
        %v328 = vld [vmem:[#allocation5 + $0xb0] sm:$0xf]
        %v329 = vld [vmem:[#allocation5 + $0xb4] sm:$0xf]
        %v330 = vld [vmem:[#allocation5 + $0xb8] sm:$0xf]
        %v331 = vld [vmem:[#allocation5 + $0xbc] sm:$0xf]
        %v332 = vld [vmem:[#allocation5 + $0xc0] sm:$0xf]
        %v333 = vld [vmem:[#allocation5 + $0xc4] sm:$0xf]
        %v334 = vld [vmem:[#allocation5 + $0xc8] sm:$0xf]
        %v335 = vld [vmem:[#allocation5 + $0xcc] sm:$0xf]
        %v336 = vld [vmem:[#allocation5 + $0xd0] sm:$0xf]
        %v337 = vld [vmem:[#allocation5 + $0xd4] sm:$0xf]
        %v338 = vld [vmem:[#allocation5 + $0xd8] sm:$0xf]
        %v339 = vld [vmem:[#allocation5 + $0xdc] sm:$0xf]
        %v340 = vld [vmem:[#allocation5 + $0xe0] sm:$0xf]
        %v341 = vld [vmem:[#allocation5 + $0xe4] sm:$0xf]
        %v342 = vld [vmem:[#allocation5 + $0xe8] sm:$0xf]
        %v343 = vld [vmem:[#allocation5 + $0xec] sm:$0xf]
        %v344 = vld [vmem:[#allocation5 + $0xf0] sm:$0xf]
        %v345 = vld [vmem:[#allocation5 + $0xf4] sm:$0xf]
        %v346 = vld [vmem:[#allocation5 + $0xf8] sm:$0xf]
        %v347 = vld [vmem:[#allocation5 + $0xfc] sm:$0xf]
        %v348 = vld [vmem:[#allocation7] sm:$0x1]
        %v350 = vlaneseq
        %v351 = vshrl.u32 %v350, 7
        %v352 = vsub.s32 0, %v351
        %v353 = vrot.slane %v348, %v352
        %v419 = vunpack.c.l.b16 %v220
        %v420 = vunpack.c.h.b16 %v220
        %v421 = vunpack.c.l.b16 %v221
        %v422 = vunpack.c.h.b16 %v221
        %v423 = vunpack.c.l.b16 %v222
        %v424 = vunpack.c.h.b16 %v222
        %v425 = vunpack.c.l.b16 %v223
        %v426 = vunpack.c.h.b16 %v223
        %v427 = vunpack.c.l.b16 %v224
        %v428 = vunpack.c.h.b16 %v224
        %v429 = vunpack.c.l.b16 %v225
        %v430 = vunpack.c.h.b16 %v225
        %v431 = vunpack.c.l.b16 %v226
        %v432 = vunpack.c.h.b16 %v226
        %v433 = vunpack.c.l.b16 %v227
        %v434 = vunpack.c.h.b16 %v227
        %v435 = vunpack.c.l.b16 %v228
        %v436 = vunpack.c.h.b16 %v228
        %v437 = vunpack.c.l.b16 %v229
        %v438 = vunpack.c.h.b16 %v229
        %v439 = vunpack.c.l.b16 %v230
        %v440 = vunpack.c.h.b16 %v230
        %v441 = vunpack.c.l.b16 %v231
        %v442 = vunpack.c.h.b16 %v231
        %v443 = vunpack.c.l.b16 %v232
        %v444 = vunpack.c.h.b16 %v232
        %v445 = vunpack.c.l.b16 %v233
        %v446 = vunpack.c.h.b16 %v233
        %v447 = vunpack.c.l.b16 %v234
        %v448 = vunpack.c.h.b16 %v234
        %v449 = vunpack.c.l.b16 %v235
        %v450 = vunpack.c.h.b16 %v235
        %v451 = vunpack.c.l.b16 %v236
        %v452 = vunpack.c.h.b16 %v236
        %v453 = vunpack.c.l.b16 %v237
        %v454 = vunpack.c.h.b16 %v237
        %v455 = vunpack.c.l.b16 %v238
        %v456 = vunpack.c.h.b16 %v238
        %v457 = vunpack.c.l.b16 %v239
        %v458 = vunpack.c.h.b16 %v239
        %v459 = vunpack.c.l.b16 %v240
        %v460 = vunpack.c.h.b16 %v240
        %v461 = vunpack.c.l.b16 %v241
        %v462 = vunpack.c.h.b16 %v241
        %v463 = vunpack.c.l.b16 %v242
        %v464 = vunpack.c.h.b16 %v242
        %v465 = vunpack.c.l.b16 %v243
        %v466 = vunpack.c.h.b16 %v243
        %v467 = vunpack.c.l.b16 %v244
        %v468 = vunpack.c.h.b16 %v244
        %v469 = vunpack.c.l.b16 %v245
        %v470 = vunpack.c.h.b16 %v245
        %v471 = vunpack.c.l.b16 %v246
        %v472 = vunpack.c.h.b16 %v246
        %v473 = vunpack.c.l.b16 %v247
        %v474 = vunpack.c.h.b16 %v247
        %v475 = vunpack.c.l.b16 %v248
        %v476 = vunpack.c.h.b16 %v248
        %v477 = vunpack.c.l.b16 %v249
        %v478 = vunpack.c.h.b16 %v249
        %v479 = vunpack.c.l.b16 %v250
        %v480 = vunpack.c.h.b16 %v250
        %v481 = vunpack.c.l.b16 %v251
        %v482 = vunpack.c.h.b16 %v251
        %v483 = vunpack.c.l.b16 %v252
        %v484 = vunpack.c.h.b16 %v252
        %v485 = vunpack.c.l.b16 %v253
        %v486 = vunpack.c.h.b16 %v253
        %v487 = vunpack.c.l.b16 %v254
        %v488 = vunpack.c.h.b16 %v254
        %v489 = vunpack.c.l.b16 %v255
        %v490 = vunpack.c.h.b16 %v255
        %v491 = vunpack.c.l.b16 %v256
        %v492 = vunpack.c.h.b16 %v256
        %v493 = vunpack.c.l.b16 %v257
        %v494 = vunpack.c.h.b16 %v257
        %v495 = vunpack.c.l.b16 %v258
        %v496 = vunpack.c.h.b16 %v258
        %v497 = vunpack.c.l.b16 %v259
        %v498 = vunpack.c.h.b16 %v259
        %v499 = vunpack.c.l.b16 %v260
        %v500 = vunpack.c.h.b16 %v260
        %v501 = vunpack.c.l.b16 %v261
        %v502 = vunpack.c.h.b16 %v261
        %v503 = vunpack.c.l.b16 %v262
        %v504 = vunpack.c.h.b16 %v262
        %v505 = vunpack.c.l.b16 %v263
        %v506 = vunpack.c.h.b16 %v263
        %v507 = vunpack.c.l.b16 %v264
        %v508 = vunpack.c.h.b16 %v264
        %v509 = vunpack.c.l.b16 %v265
        %v510 = vunpack.c.h.b16 %v265
        %v511 = vunpack.c.l.b16 %v266
        %v512 = vunpack.c.h.b16 %v266
        %v513 = vunpack.c.l.b16 %v267
        %v514 = vunpack.c.h.b16 %v267
        %v515 = vunpack.c.l.b16 %v268
        %v516 = vunpack.c.h.b16 %v268
        %v517 = vunpack.c.l.b16 %v269
        %v518 = vunpack.c.h.b16 %v269
        %v519 = vunpack.c.l.b16 %v270
        %v520 = vunpack.c.h.b16 %v270
        %v521 = vunpack.c.l.b16 %v271
        %v522 = vunpack.c.h.b16 %v271
        %v523 = vunpack.c.l.b16 %v272
        %v524 = vunpack.c.h.b16 %v272
        %v525 = vunpack.c.l.b16 %v273
        %v526 = vunpack.c.h.b16 %v273
        %v527 = vunpack.c.l.b16 %v274
        %v528 = vunpack.c.h.b16 %v274
        %v529 = vunpack.c.l.b16 %v275
        %v530 = vunpack.c.h.b16 %v275
        %v531 = vunpack.c.l.b16 %v276
        %v532 = vunpack.c.h.b16 %v276
        %v533 = vunpack.c.l.b16 %v277
        %v534 = vunpack.c.h.b16 %v277
        %v535 = vunpack.c.l.b16 %v278
        %v536 = vunpack.c.h.b16 %v278
        %v537 = vunpack.c.l.b16 %v279
        %v538 = vunpack.c.h.b16 %v279
        %v539 = vunpack.c.l.b16 %v280
        %v540 = vunpack.c.h.b16 %v280
        %v541 = vunpack.c.l.b16 %v281
        %v542 = vunpack.c.h.b16 %v281
        %v543 = vunpack.c.l.b16 %v282
        %v544 = vunpack.c.h.b16 %v282
        %v545 = vunpack.c.l.b16 %v283
        %v546 = vunpack.c.h.b16 %v283
        %v547 = vpack.c.b16 %v423, %v419
        %v548 = vpack.c.b16 %v424, %v420
        %v549 = vpack.c.b16 %v425, %v421
        %v550 = vpack.c.b16 %v426, %v422
        %v551 = vpack.c.b16 %v431, %v427
        %v552 = vpack.c.b16 %v432, %v428
        %v553 = vpack.c.b16 %v433, %v429
        %v554 = vpack.c.b16 %v434, %v430
        %v555 = vpack.c.b16 %v439, %v435
        %v556 = vpack.c.b16 %v440, %v436
        %v557 = vpack.c.b16 %v441, %v437
        %v558 = vpack.c.b16 %v442, %v438
        %v559 = vpack.c.b16 %v447, %v443
        %v560 = vpack.c.b16 %v448, %v444
        %v561 = vpack.c.b16 %v449, %v445
        %v562 = vpack.c.b16 %v450, %v446
        %v563 = vpack.c.b16 %v455, %v451
        %v564 = vpack.c.b16 %v456, %v452
        %v565 = vpack.c.b16 %v457, %v453
        %v566 = vpack.c.b16 %v458, %v454
        %v567 = vpack.c.b16 %v463, %v459
        %v568 = vpack.c.b16 %v464, %v460
        %v569 = vpack.c.b16 %v465, %v461
        %v570 = vpack.c.b16 %v466, %v462
        %v571 = vpack.c.b16 %v471, %v467
        %v572 = vpack.c.b16 %v472, %v468
        %v573 = vpack.c.b16 %v473, %v469
        %v574 = vpack.c.b16 %v474, %v470
        %v575 = vpack.c.b16 %v479, %v475
        %v576 = vpack.c.b16 %v480, %v476
        %v577 = vpack.c.b16 %v481, %v477
        %v578 = vpack.c.b16 %v482, %v478
        %v579 = vpack.c.b16 %v487, %v483
        %v580 = vpack.c.b16 %v488, %v484
        %v581 = vpack.c.b16 %v489, %v485
        %v582 = vpack.c.b16 %v490, %v486
        %v583 = vpack.c.b16 %v495, %v491
        %v584 = vpack.c.b16 %v496, %v492
        %v585 = vpack.c.b16 %v497, %v493
        %v586 = vpack.c.b16 %v498, %v494
        %v587 = vpack.c.b16 %v503, %v499
        %v588 = vpack.c.b16 %v504, %v500
        %v589 = vpack.c.b16 %v505, %v501
        %v590 = vpack.c.b16 %v506, %v502
        %v591 = vpack.c.b16 %v511, %v507
        %v592 = vpack.c.b16 %v512, %v508
        %v593 = vpack.c.b16 %v513, %v509
        %v594 = vpack.c.b16 %v514, %v510
        %v595 = vpack.c.b16 %v519, %v515
        %v596 = vpack.c.b16 %v520, %v516
        %v597 = vpack.c.b16 %v521, %v517
        %v598 = vpack.c.b16 %v522, %v518
        %v599 = vpack.c.b16 %v527, %v523
        %v600 = vpack.c.b16 %v528, %v524
        %v601 = vpack.c.b16 %v529, %v525
        %v602 = vpack.c.b16 %v530, %v526
        %v603 = vpack.c.b16 %v535, %v531
        %v604 = vpack.c.b16 %v536, %v532
        %v605 = vpack.c.b16 %v537, %v533
        %v606 = vpack.c.b16 %v538, %v534
        %v607 = vpack.c.b16 %v543, %v539
        %v608 = vpack.c.b16 %v544, %v540
        %v609 = vpack.c.b16 %v545, %v541
        %v610 = vpack.c.b16 %v546, %v542
        %v739 = vunpack.c.l.b16 %v284
        %v740 = vunpack.c.l.b16 %v285
        %v741 = vunpack.c.l.b16 %v286
        %v742 = vunpack.c.l.b16 %v287
        %v743 = vunpack.c.l.b16 %v288
        %v744 = vunpack.c.l.b16 %v289
        %v745 = vunpack.c.l.b16 %v290
        %v746 = vunpack.c.l.b16 %v291
        %v747 = vunpack.c.l.b16 %v292
        %v748 = vunpack.c.l.b16 %v293
        %v749 = vunpack.c.l.b16 %v294
        %v750 = vunpack.c.l.b16 %v295
        %v751 = vunpack.c.l.b16 %v296
        %v752 = vunpack.c.l.b16 %v297
        %v753 = vunpack.c.l.b16 %v298
        %v754 = vunpack.c.l.b16 %v299
        %v755 = vunpack.c.l.b16 %v300
        %v756 = vunpack.c.l.b16 %v301
        %v757 = vunpack.c.l.b16 %v302
        %v758 = vunpack.c.l.b16 %v303
        %v759 = vunpack.c.l.b16 %v304
        %v760 = vunpack.c.l.b16 %v305
        %v761 = vunpack.c.l.b16 %v306
        %v762 = vunpack.c.l.b16 %v307
        %v763 = vunpack.c.l.b16 %v308
        %v764 = vunpack.c.l.b16 %v309
        %v765 = vunpack.c.l.b16 %v310
        %v766 = vunpack.c.l.b16 %v311
        %v767 = vunpack.c.l.b16 %v312
        %v768 = vunpack.c.l.b16 %v313
        %v769 = vunpack.c.l.b16 %v314
        %v770 = vunpack.c.l.b16 %v315
        %v771 = vunpack.c.l.b16 %v316
        %v772 = vunpack.c.l.b16 %v317
        %v773 = vunpack.c.l.b16 %v318
        %v774 = vunpack.c.l.b16 %v319
        %v775 = vunpack.c.l.b16 %v320
        %v776 = vunpack.c.l.b16 %v321
        %v777 = vunpack.c.l.b16 %v322
        %v778 = vunpack.c.l.b16 %v323
        %v779 = vunpack.c.l.b16 %v324
        %v780 = vunpack.c.l.b16 %v325
        %v781 = vunpack.c.l.b16 %v326
        %v782 = vunpack.c.l.b16 %v327
        %v783 = vunpack.c.l.b16 %v328
        %v784 = vunpack.c.l.b16 %v329
        %v785 = vunpack.c.l.b16 %v330
        %v786 = vunpack.c.l.b16 %v331
        %v787 = vunpack.c.l.b16 %v332
        %v788 = vunpack.c.l.b16 %v333
        %v789 = vunpack.c.l.b16 %v334
        %v790 = vunpack.c.l.b16 %v335
        %v791 = vunpack.c.l.b16 %v336
        %v792 = vunpack.c.l.b16 %v337
        %v793 = vunpack.c.l.b16 %v338
        %v794 = vunpack.c.l.b16 %v339
        %v795 = vunpack.c.l.b16 %v340
        %v796 = vunpack.c.l.b16 %v341
        %v797 = vunpack.c.l.b16 %v342
        %v798 = vunpack.c.l.b16 %v343
        %v799 = vunpack.c.l.b16 %v344
        %v800 = vunpack.c.l.b16 %v345
        %v801 = vunpack.c.l.b16 %v346
        %v802 = vunpack.c.l.b16 %v347
        %v803 = vpack.c.b16 %v740, %v739
        %v804 = vpack.c.b16 %v742, %v741
        %v805 = vpack.c.b16 %v744, %v743
        %v806 = vpack.c.b16 %v746, %v745
        %v807 = vpack.c.b16 %v748, %v747
        %v808 = vpack.c.b16 %v750, %v749
        %v809 = vpack.c.b16 %v752, %v751
        %v810 = vpack.c.b16 %v754, %v753
        %v811 = vpack.c.b16 %v756, %v755
        %v812 = vpack.c.b16 %v758, %v757
        %v813 = vpack.c.b16 %v760, %v759
        %v814 = vpack.c.b16 %v762, %v761
        %v815 = vpack.c.b16 %v764, %v763
        %v816 = vpack.c.b16 %v766, %v765
        %v817 = vpack.c.b16 %v768, %v767
        %v818 = vpack.c.b16 %v770, %v769
        %v819 = vpack.c.b16 %v772, %v771
        %v820 = vpack.c.b16 %v774, %v773
        %v821 = vpack.c.b16 %v776, %v775
        %v822 = vpack.c.b16 %v778, %v777
        %v823 = vpack.c.b16 %v780, %v779
        %v824 = vpack.c.b16 %v782, %v781
        %v825 = vpack.c.b16 %v784, %v783
        %v826 = vpack.c.b16 %v786, %v785
        %v827 = vpack.c.b16 %v788, %v787
        %v828 = vpack.c.b16 %v790, %v789
        %v829 = vpack.c.b16 %v792, %v791
        %v830 = vpack.c.b16 %v794, %v793
        %v831 = vpack.c.b16 %v796, %v795
        %v832 = vpack.c.b16 %v798, %v797
        %v833 = vpack.c.b16 %v800, %v799
        %v834 = vpack.c.b16 %v802, %v801
        %867 = vmatprep.subr.bf16.mxu0 0
        %868 = vmatpush1.bf16.msra.mxu0 %v803
        %869 = vmatprep.subr.bf16.mxu0 0
        %870 = vmatpush1.bf16.msra.mxu0 %v804
        %871 = vmatprep.subr.bf16.mxu0 0
        %872 = vmatpush1.bf16.msra.mxu0 %v805
        %873 = vmatprep.subr.bf16.mxu0 0
        %874 = vmatpush1.bf16.msra.mxu0 %v806
        %875 = vmatprep.subr.bf16.mxu0 0
        %876 = vmatpush1.bf16.msra.mxu0 %v807
        %877 = vmatprep.subr.bf16.mxu0 0
        %878 = vmatpush1.bf16.msra.mxu0 %v808
        %879 = vmatprep.subr.bf16.mxu0 0
        %880 = vmatpush1.bf16.msra.mxu0 %v809
        %881 = vmatprep.subr.bf16.mxu0 0
        %882 = vmatpush1.bf16.msra.mxu0 %v810
        %883 = vmatprep.subr.bf16.mxu0 0
        %884 = vmatpush1.bf16.msra.mxu0 %v811
        %885 = vmatprep.subr.bf16.mxu0 0
        %886 = vmatpush1.bf16.msra.mxu0 %v812
        %887 = vmatprep.subr.bf16.mxu0 0
        %888 = vmatpush1.bf16.msra.mxu0 %v813
        %889 = vmatprep.subr.bf16.mxu0 0
        %890 = vmatpush1.bf16.msra.mxu0 %v814
        %891 = vmatprep.subr.bf16.mxu0 0
        %892 = vmatpush1.bf16.msra.mxu0 %v815
        %893 = vmatprep.subr.bf16.mxu0 0
        %894 = vmatpush1.bf16.msra.mxu0 %v816
        %895 = vmatprep.subr.bf16.mxu0 0
        %896 = vmatpush1.bf16.msra.mxu0 %v817
        %897 = vmatprep.subr.bf16.mxu0 0
        %898 = vmatpush1.bf16.msra.mxu0 %v818
        %899 = vmatprep.mubr.bf16.mxu0 %v548
        %900 = vmatmul.mubr.bf16.gmra.mrb[0].mxu0 %v547
        %v901 = vpop.f32.mrb[0].mxu0
        %v902 = vadd.f32 %v353, %v901
        %v903 = vpop.f32.mrb[0].mxu0
        %v904 = vpop.f32.mrb[0].mxu0
        %v905 = vadd.f32 %v353, %v904
        %v906 = vpop.f32.mrb[0].mxu0
        %907 = vmatprep.mubr.bf16.mxu0 %v552
        %908 = vmatmul.mubr.bf16.gmra.mrb[0].mxu0 %v551
        %v909 = vpop.f32.mrb[0].mxu0
        %v910 = vadd.f32 %v353, %v909
        %v911 = vpop.f32.mrb[0].mxu0
        %v912 = vpop.f32.mrb[0].mxu0
        %v913 = vadd.f32 %v353, %v912
        %v914 = vpop.f32.mrb[0].mxu0
        %915 = vmatprep.mubr.bf16.mxu0 %v556
        %916 = vmatmul.mubr.bf16.gmra.mrb[0].mxu0 %v555
        %v917 = vpop.f32.mrb[0].mxu0
        %v918 = vadd.f32 %v353, %v917
        %v919 = vpop.f32.mrb[0].mxu0
        %v920 = vpop.f32.mrb[0].mxu0
        %v921 = vadd.f32 %v353, %v920
        %v922 = vpop.f32.mrb[0].mxu0
        %923 = vmatprep.mubr.bf16.mxu0 %v560
        %924 = vmatmul.mubr.bf16.gmra.mrb[0].mxu0 %v559
        %v925 = vpop.f32.mrb[0].mxu0
        %v926 = vadd.f32 %v353, %v925
        %v927 = vpop.f32.mrb[0].mxu0
        %v928 = vpop.f32.mrb[0].mxu0
        %v929 = vadd.f32 %v353, %v928
        %v930 = vpop.f32.mrb[0].mxu0
        %931 = vmatprep.mubr.bf16.mxu0 %v564
        %932 = vmatmul.mubr.bf16.gmra.mrb[0].mxu0 %v563
        %v933 = vpop.f32.mrb[0].mxu0
        %v934 = vadd.f32 %v353, %v933
        %v935 = vpop.f32.mrb[0].mxu0
        %v936 = vpop.f32.mrb[0].mxu0
        %v937 = vadd.f32 %v353, %v936
        %v938 = vpop.f32.mrb[0].mxu0
        %939 = vmatprep.mubr.bf16.mxu0 %v568
        %940 = vmatmul.mubr.bf16.gmra.mrb[0].mxu0 %v567
        %v941 = vpop.f32.mrb[0].mxu0
        %v942 = vadd.f32 %v353, %v941
        %v943 = vpop.f32.mrb[0].mxu0
        %v944 = vpop.f32.mrb[0].mxu0
        %v945 = vadd.f32 %v353, %v944
        %v946 = vpop.f32.mrb[0].mxu0
        %947 = vmatprep.mubr.bf16.mxu0 %v572
        %948 = vmatmul.mubr.bf16.gmra.mrb[0].mxu0 %v571
        %v949 = vpop.f32.mrb[0].mxu0
        %v950 = vadd.f32 %v353, %v949
        %v951 = vpop.f32.mrb[0].mxu0
        %v952 = vpop.f32.mrb[0].mxu0
        %v953 = vadd.f32 %v353, %v952
        %v954 = vpop.f32.mrb[0].mxu0
        %955 = vmatprep.mubr.bf16.mxu0 %v576
        %956 = vmatmul.mubr.bf16.gmra.mrb[0].mxu0 %v575
        %v957 = vpop.f32.mrb[0].mxu0
        %v958 = vadd.f32 %v353, %v957
        %v959 = vpop.f32.mrb[0].mxu0
        %v960 = vpop.f32.mrb[0].mxu0
        %v961 = vadd.f32 %v353, %v960
        %v962 = vpop.f32.mrb[0].mxu0
        %963 = vmatprep.mubr.bf16.mxu0 %v580
        %964 = vmatmul.mubr.bf16.gmra.mrb[0].mxu0 %v579
        %v965 = vpop.f32.mrb[0].mxu0
        %v966 = vadd.f32 %v353, %v965
        %v967 = vpop.f32.mrb[0].mxu0
        %v968 = vpop.f32.mrb[0].mxu0
        %v969 = vadd.f32 %v353, %v968
        %v970 = vpop.f32.mrb[0].mxu0
        %971 = vmatprep.mubr.bf16.mxu0 %v584
        %972 = vmatmul.mubr.bf16.gmra.mrb[0].mxu0 %v583
        %v973 = vpop.f32.mrb[0].mxu0
        %v974 = vadd.f32 %v353, %v973
        %v975 = vpop.f32.mrb[0].mxu0
        %v976 = vpop.f32.mrb[0].mxu0
        %v977 = vadd.f32 %v353, %v976
        %v978 = vpop.f32.mrb[0].mxu0
        %979 = vmatprep.mubr.bf16.mxu0 %v588
        %980 = vmatmul.mubr.bf16.gmra.mrb[0].mxu0 %v587
        %v981 = vpop.f32.mrb[0].mxu0
        %v982 = vadd.f32 %v353, %v981
        %v983 = vpop.f32.mrb[0].mxu0
        %v984 = vpop.f32.mrb[0].mxu0
        %v985 = vadd.f32 %v353, %v984
        %v986 = vpop.f32.mrb[0].mxu0
        %987 = vmatprep.mubr.bf16.mxu0 %v592
        %988 = vmatmul.mubr.bf16.gmra.mrb[0].mxu0 %v591
        %v989 = vpop.f32.mrb[0].mxu0
        %v990 = vadd.f32 %v353, %v989
        %v991 = vpop.f32.mrb[0].mxu0
        %v992 = vpop.f32.mrb[0].mxu0
        %v993 = vadd.f32 %v353, %v992
        %v994 = vpop.f32.mrb[0].mxu0
        %995 = vmatprep.mubr.bf16.mxu0 %v596
        %996 = vmatmul.mubr.bf16.gmra.mrb[0].mxu0 %v595
        %v997 = vpop.f32.mrb[0].mxu0
        %v998 = vadd.f32 %v353, %v997
        %v999 = vpop.f32.mrb[0].mxu0
        %v1000 = vpop.f32.mrb[0].mxu0
        %v1001 = vadd.f32 %v353, %v1000
        %v1002 = vpop.f32.mrb[0].mxu0
        %1003 = vmatprep.mubr.bf16.mxu0 %v600
        %1004 = vmatmul.mubr.bf16.gmra.mrb[0].mxu0 %v599
        %v1005 = vpop.f32.mrb[0].mxu0
        %v1006 = vadd.f32 %v353, %v1005
        %v1007 = vpop.f32.mrb[0].mxu0
        %v1008 = vpop.f32.mrb[0].mxu0
        %v1009 = vadd.f32 %v353, %v1008
        %v1010 = vpop.f32.mrb[0].mxu0
        %1011 = vmatprep.mubr.bf16.mxu0 %v604
        %1012 = vmatmul.mubr.bf16.gmra.mrb[0].mxu0 %v603
        %v1013 = vpop.f32.mrb[0].mxu0
        %v1014 = vadd.f32 %v353, %v1013
        %v1015 = vpop.f32.mrb[0].mxu0
        %v1016 = vpop.f32.mrb[0].mxu0
        %v1017 = vadd.f32 %v353, %v1016
        %v1018 = vpop.f32.mrb[0].mxu0
        %1019 = vmatprep.mubr.bf16.mxu0 %v608
        %1020 = vmatmul.mubr.bf16.gmra.mrb[0].mxu0 %v607
        %v1021 = vpop.f32.mrb[0].mxu0
        %v1022 = vadd.f32 %v353, %v1021
        %v1023 = vpop.f32.mrb[0].mxu0
        %v1024 = vpop.f32.mrb[0].mxu0
        %v1025 = vadd.f32 %v353, %v1024
        %v1026 = vpop.f32.mrb[0].mxu0
        %1027 = vdwg.mxu0
        %1028 = vmatprep.subr.bf16.mxu0 0
        %1029 = vmatpush1.bf16.msra.mxu0 %v819
        %1030 = vmatprep.subr.bf16.mxu0 0
        %1031 = vmatpush1.bf16.msra.mxu0 %v820
        %1032 = vmatprep.subr.bf16.mxu0 0
        %1033 = vmatpush1.bf16.msra.mxu0 %v821
        %1034 = vmatprep.subr.bf16.mxu0 0
        %1035 = vmatpush1.bf16.msra.mxu0 %v822
        %1036 = vmatprep.subr.bf16.mxu0 0
        %1037 = vmatpush1.bf16.msra.mxu0 %v823
        %1038 = vmatprep.subr.bf16.mxu0 0
        %1039 = vmatpush1.bf16.msra.mxu0 %v824
        %1040 = vmatprep.subr.bf16.mxu0 0
        %1041 = vmatpush1.bf16.msra.mxu0 %v825
        %1042 = vmatprep.subr.bf16.mxu0 0
        %1043 = vmatpush1.bf16.msra.mxu0 %v826
        %1044 = vmatprep.subr.bf16.mxu0 0
        %1045 = vmatpush1.bf16.msra.mxu0 %v827
        %1046 = vmatprep.subr.bf16.mxu0 0
        %1047 = vmatpush1.bf16.msra.mxu0 %v828
        %1048 = vmatprep.subr.bf16.mxu0 0
        %1049 = vmatpush1.bf16.msra.mxu0 %v829
        %1050 = vmatprep.subr.bf16.mxu0 0
        %1051 = vmatpush1.bf16.msra.mxu0 %v830
        %1052 = vmatprep.subr.bf16.mxu0 0
        %1053 = vmatpush1.bf16.msra.mxu0 %v831
        %1054 = vmatprep.subr.bf16.mxu0 0
        %1055 = vmatpush1.bf16.msra.mxu0 %v832
        %1056 = vmatprep.subr.bf16.mxu0 0
        %1057 = vmatpush1.bf16.msra.mxu0 %v833
        %1058 = vmatprep.subr.bf16.mxu0 0
        %1059 = vmatpush1.bf16.msra.mxu0 %v834
        %1060 = vmatprep.mubr.bf16.mxu0 %v550
        %1061 = vmatmul.mubr.bf16.gmra.mrb[0].mxu0 %v549
        %v1062 = vpop.f32.mrb[0].mxu0
        %v1063 = vadd.f32 %v902, %v1062
        %v1064 = vpop.f32.mrb[0].mxu0
        %v1065 = vpop.f32.mrb[0].mxu0
        %v1066 = vadd.f32 %v905, %v1065
        %v1067 = vpop.f32.mrb[0].mxu0
        %1068 = vmatprep.mubr.bf16.mxu0 %v554
        %1069 = vmatmul.mubr.bf16.gmra.mrb[0].mxu0 %v553
        %v1070 = vpop.f32.mrb[0].mxu0
        %v1071 = vadd.f32 %v910, %v1070
        %v1072 = vpop.f32.mrb[0].mxu0
        %v1073 = vpop.f32.mrb[0].mxu0
        %v1074 = vadd.f32 %v913, %v1073
        %v1075 = vpop.f32.mrb[0].mxu0
        %1076 = vmatprep.mubr.bf16.mxu0 %v558
        %1077 = vmatmul.mubr.bf16.gmra.mrb[0].mxu0 %v557
        %v1078 = vpop.f32.mrb[0].mxu0
        %v1079 = vadd.f32 %v918, %v1078
        %v1080 = vpop.f32.mrb[0].mxu0
        %v1081 = vpop.f32.mrb[0].mxu0
        %v1082 = vadd.f32 %v921, %v1081
        %v1083 = vpop.f32.mrb[0].mxu0
        %1084 = vmatprep.mubr.bf16.mxu0 %v562
        %1085 = vmatmul.mubr.bf16.gmra.mrb[0].mxu0 %v561
        %v1086 = vpop.f32.mrb[0].mxu0
        %v1087 = vadd.f32 %v926, %v1086
        %v1088 = vpop.f32.mrb[0].mxu0
        %v1089 = vpop.f32.mrb[0].mxu0
        %v1090 = vadd.f32 %v929, %v1089
        %v1091 = vpop.f32.mrb[0].mxu0
        %1092 = vmatprep.mubr.bf16.mxu0 %v566
        %1093 = vmatmul.mubr.bf16.gmra.mrb[0].mxu0 %v565
        %v1094 = vpop.f32.mrb[0].mxu0
        %v1095 = vadd.f32 %v934, %v1094
        %v1096 = vpop.f32.mrb[0].mxu0
        %v1097 = vpop.f32.mrb[0].mxu0
        %v1098 = vadd.f32 %v937, %v1097
        %v1099 = vpop.f32.mrb[0].mxu0
        %1100 = vmatprep.mubr.bf16.mxu0 %v570
        %1101 = vmatmul.mubr.bf16.gmra.mrb[0].mxu0 %v569
        %v1102 = vpop.f32.mrb[0].mxu0
        %v1103 = vadd.f32 %v942, %v1102
        %v1104 = vpop.f32.mrb[0].mxu0
        %v1105 = vpop.f32.mrb[0].mxu0
        %v1106 = vadd.f32 %v945, %v1105
        %v1107 = vpop.f32.mrb[0].mxu0
        %1108 = vmatprep.mubr.bf16.mxu0 %v574
        %1109 = vmatmul.mubr.bf16.gmra.mrb[0].mxu0 %v573
        %v1110 = vpop.f32.mrb[0].mxu0
        %v1111 = vadd.f32 %v950, %v1110
        %v1112 = vpop.f32.mrb[0].mxu0
        %v1113 = vpop.f32.mrb[0].mxu0
        %v1114 = vadd.f32 %v953, %v1113
        %v1115 = vpop.f32.mrb[0].mxu0
        %1116 = vmatprep.mubr.bf16.mxu0 %v578
        %1117 = vmatmul.mubr.bf16.gmra.mrb[0].mxu0 %v577
        %v1118 = vpop.f32.mrb[0].mxu0
        %v1119 = vadd.f32 %v958, %v1118
        %v1120 = vpop.f32.mrb[0].mxu0
        %v1121 = vpop.f32.mrb[0].mxu0
        %v1122 = vadd.f32 %v961, %v1121
        %v1123 = vpop.f32.mrb[0].mxu0
        %1124 = vmatprep.mubr.bf16.mxu0 %v582
        %1125 = vmatmul.mubr.bf16.gmra.mrb[0].mxu0 %v581
        %v1126 = vpop.f32.mrb[0].mxu0
        %v1127 = vadd.f32 %v966, %v1126
        %v1128 = vpop.f32.mrb[0].mxu0
        %v1129 = vpop.f32.mrb[0].mxu0
        %v1130 = vadd.f32 %v969, %v1129
        %v1131 = vpop.f32.mrb[0].mxu0
        %1132 = vmatprep.mubr.bf16.mxu0 %v586
        %1133 = vmatmul.mubr.bf16.gmra.mrb[0].mxu0 %v585
        %v1134 = vpop.f32.mrb[0].mxu0
        %v1135 = vadd.f32 %v974, %v1134
        %v1136 = vpop.f32.mrb[0].mxu0
        %v1137 = vpop.f32.mrb[0].mxu0
        %v1138 = vadd.f32 %v977, %v1137
        %v1139 = vpop.f32.mrb[0].mxu0
        %1140 = vmatprep.mubr.bf16.mxu0 %v590
        %1141 = vmatmul.mubr.bf16.gmra.mrb[0].mxu0 %v589
        %v1142 = vpop.f32.mrb[0].mxu0
        %v1143 = vadd.f32 %v982, %v1142
        %v1144 = vpop.f32.mrb[0].mxu0
        %v1145 = vpop.f32.mrb[0].mxu0
        %v1146 = vadd.f32 %v985, %v1145
        %v1147 = vpop.f32.mrb[0].mxu0
        %1148 = vmatprep.mubr.bf16.mxu0 %v594
        %1149 = vmatmul.mubr.bf16.gmra.mrb[0].mxu0 %v593
        %v1150 = vpop.f32.mrb[0].mxu0
        %v1151 = vadd.f32 %v990, %v1150
        %v1152 = vpop.f32.mrb[0].mxu0
        %v1153 = vpop.f32.mrb[0].mxu0
        %v1154 = vadd.f32 %v993, %v1153
        %v1155 = vpop.f32.mrb[0].mxu0
        %1156 = vmatprep.mubr.bf16.mxu0 %v598
        %1157 = vmatmul.mubr.bf16.gmra.mrb[0].mxu0 %v597
        %v1158 = vpop.f32.mrb[0].mxu0
        %v1159 = vadd.f32 %v998, %v1158
        %v1160 = vpop.f32.mrb[0].mxu0
        %v1161 = vpop.f32.mrb[0].mxu0
        %v1162 = vadd.f32 %v1001, %v1161
        %v1163 = vpop.f32.mrb[0].mxu0
        %1164 = vmatprep.mubr.bf16.mxu0 %v602
        %1165 = vmatmul.mubr.bf16.gmra.mrb[0].mxu0 %v601
        %v1166 = vpop.f32.mrb[0].mxu0
        %v1167 = vadd.f32 %v1006, %v1166
        %v1168 = vpop.f32.mrb[0].mxu0
        %v1169 = vpop.f32.mrb[0].mxu0
        %v1170 = vadd.f32 %v1009, %v1169
        %v1171 = vpop.f32.mrb[0].mxu0
        %1172 = vmatprep.mubr.bf16.mxu0 %v606
        %1173 = vmatmul.mubr.bf16.gmra.mrb[0].mxu0 %v605
        %v1174 = vpop.f32.mrb[0].mxu0
        %v1175 = vadd.f32 %v1014, %v1174
        %v1176 = vpop.f32.mrb[0].mxu0
        %v1177 = vpop.f32.mrb[0].mxu0
        %v1178 = vadd.f32 %v1017, %v1177
        %v1179 = vpop.f32.mrb[0].mxu0
        %1180 = vmatprep.mubr.bf16.mxu0 %v610
        %1181 = vmatmul.mubr.bf16.gmra.mrb[0].mxu0 %v609
        %v1182 = vpop.f32.mrb[0].mxu0
        %v1183 = vadd.f32 %v1022, %v1182
        %v1184 = vpop.f32.mrb[0].mxu0
        %v1185 = vpop.f32.mrb[0].mxu0
        %v1186 = vadd.f32 %v1025, %v1185
        %v1187 = vpop.f32.mrb[0].mxu0
        %1188 = vdwg.mxu0
        %v1189 = vmax.f32 %v1063, 0.0
        %v1190 = vmax.f32 %v1066, 0.0
        %v1191 = vmax.f32 %v1071, 0.0
        %v1192 = vmax.f32 %v1074, 0.0
        %v1193 = vmax.f32 %v1079, 0.0
        %v1194 = vmax.f32 %v1082, 0.0
        %v1195 = vmax.f32 %v1087, 0.0
        %v1196 = vmax.f32 %v1090, 0.0
        %v1197 = vmax.f32 %v1095, 0.0
        %v1198 = vmax.f32 %v1098, 0.0
        %v1199 = vmax.f32 %v1103, 0.0
        %v1200 = vmax.f32 %v1106, 0.0
        %v1201 = vmax.f32 %v1111, 0.0
        %v1202 = vmax.f32 %v1114, 0.0
        %v1203 = vmax.f32 %v1119, 0.0
        %v1204 = vmax.f32 %v1122, 0.0
        %v1205 = vmax.f32 %v1127, 0.0
        %v1206 = vmax.f32 %v1130, 0.0
        %v1207 = vmax.f32 %v1135, 0.0
        %v1208 = vmax.f32 %v1138, 0.0
        %v1209 = vmax.f32 %v1143, 0.0
        %v1210 = vmax.f32 %v1146, 0.0
        %v1211 = vmax.f32 %v1151, 0.0
        %v1212 = vmax.f32 %v1154, 0.0
        %v1213 = vmax.f32 %v1159, 0.0
        %v1214 = vmax.f32 %v1162, 0.0
        %v1215 = vmax.f32 %v1167, 0.0
        %v1216 = vmax.f32 %v1170, 0.0
        %v1217 = vmax.f32 %v1175, 0.0
        %v1218 = vmax.f32 %v1178, 0.0
        %v1219 = vmax.f32 %v1183, 0.0
        %v1220 = vmax.f32 %v1186, 0.0
        %v1221 = vpack.c.bf16 %v1190, %v1189
        %v1222 = vpack.c.bf16 %v1192, %v1191
        %v1223 = vpack.c.bf16 %v1194, %v1193
        %v1224 = vpack.c.bf16 %v1196, %v1195
        %v1225 = vpack.c.bf16 %v1198, %v1197
        %v1226 = vpack.c.bf16 %v1200, %v1199
        %v1227 = vpack.c.bf16 %v1202, %v1201
        %v1228 = vpack.c.bf16 %v1204, %v1203
        %v1229 = vpack.c.bf16 %v1206, %v1205
        %v1230 = vpack.c.bf16 %v1208, %v1207
        %v1231 = vpack.c.bf16 %v1210, %v1209
        %v1232 = vpack.c.bf16 %v1212, %v1211
        %v1233 = vpack.c.bf16 %v1214, %v1213
        %v1234 = vpack.c.bf16 %v1216, %v1215
        %v1235 = vpack.c.bf16 %v1218, %v1217
        %v1236 = vpack.c.bf16 %v1220, %v1219
        %v1253 = vunpack.c.l.b16 %v1221
        %v1254 = vunpack.c.h.b16 %v1221
        %v1255 = vunpack.c.l.b16 %v1222
        %v1256 = vunpack.c.h.b16 %v1222
        %v1257 = vunpack.c.l.b16 %v1223
        %v1258 = vunpack.c.h.b16 %v1223
        %v1259 = vunpack.c.l.b16 %v1224
        %v1260 = vunpack.c.h.b16 %v1224
        %v1261 = vunpack.c.l.b16 %v1225
        %v1262 = vunpack.c.h.b16 %v1225
        %v1263 = vunpack.c.l.b16 %v1226
        %v1264 = vunpack.c.h.b16 %v1226
        %v1265 = vunpack.c.l.b16 %v1227
        %v1266 = vunpack.c.h.b16 %v1227
        %v1267 = vunpack.c.l.b16 %v1228
        %v1268 = vunpack.c.h.b16 %v1228
        %v1269 = vunpack.c.l.b16 %v1229
        %v1270 = vunpack.c.h.b16 %v1229
        %v1271 = vunpack.c.l.b16 %v1230
        %v1272 = vunpack.c.h.b16 %v1230
        %v1273 = vunpack.c.l.b16 %v1231
        %v1274 = vunpack.c.h.b16 %v1231
        %v1275 = vunpack.c.l.b16 %v1232
        %v1276 = vunpack.c.h.b16 %v1232
        %v1277 = vunpack.c.l.b16 %v1233
        %v1278 = vunpack.c.h.b16 %v1233
        %v1279 = vunpack.c.l.b16 %v1234
        %v1280 = vunpack.c.h.b16 %v1234
        %v1281 = vunpack.c.l.b16 %v1235
        %v1282 = vunpack.c.h.b16 %v1235
        %v1283 = vunpack.c.l.b16 %v1236
        %v1284 = vunpack.c.h.b16 %v1236
        %v1285 = vpack.c.b16 %v1253, %v1253
        %v1286 = vpack.c.b16 %v1254, %v1254
        %v1287 = vpack.c.b16 %v1255, %v1255
        %v1288 = vpack.c.b16 %v1256, %v1256
        %v1289 = vpack.c.b16 %v1257, %v1257
        %v1290 = vpack.c.b16 %v1258, %v1258
        %v1291 = vpack.c.b16 %v1259, %v1259
        %v1292 = vpack.c.b16 %v1260, %v1260
        %v1293 = vpack.c.b16 %v1261, %v1261
        %v1294 = vpack.c.b16 %v1262, %v1262
        %v1295 = vpack.c.b16 %v1263, %v1263
        %v1296 = vpack.c.b16 %v1264, %v1264
        %v1297 = vpack.c.b16 %v1265, %v1265
        %v1298 = vpack.c.b16 %v1266, %v1266
        %v1299 = vpack.c.b16 %v1267, %v1267
        %v1300 = vpack.c.b16 %v1268, %v1268
        %v1301 = vpack.c.b16 %v1269, %v1269
        %v1302 = vpack.c.b16 %v1270, %v1270
        %v1303 = vpack.c.b16 %v1271, %v1271
        %v1304 = vpack.c.b16 %v1272, %v1272
        %v1305 = vpack.c.b16 %v1273, %v1273
        %v1306 = vpack.c.b16 %v1274, %v1274
        %v1307 = vpack.c.b16 %v1275, %v1275
        %v1308 = vpack.c.b16 %v1276, %v1276
        %v1309 = vpack.c.b16 %v1277, %v1277
        %v1310 = vpack.c.b16 %v1278, %v1278
        %v1311 = vpack.c.b16 %v1279, %v1279
        %v1312 = vpack.c.b16 %v1280, %v1280
        %v1313 = vpack.c.b16 %v1281, %v1281
        %v1314 = vpack.c.b16 %v1282, %v1282
        %v1315 = vpack.c.b16 %v1283, %v1283
        %v1316 = vpack.c.b16 %v1284, %v1284
        %1349 = vst [vmem:[%s216] sm:$0xf] %v1285
        %1350 = vst [vmem:[%s216 + $0x4] sm:$0xf] %v1286
        %1351 = vst [vmem:[%s216 + $0x8] sm:$0xf] %v1287
        %1352 = vst [vmem:[%s216 + $0xc] sm:$0xf] %v1288
        %1353 = vst [vmem:[%s216 + $0x10] sm:$0xf] %v1289
        %1354 = vst [vmem:[%s216 + $0x14] sm:$0xf] %v1290
        %1355 = vst [vmem:[%s216 + $0x18] sm:$0xf] %v1291
        %1356 = vst [vmem:[%s216 + $0x1c] sm:$0xf] %v1292
        %1357 = vst [vmem:[%s216 + $0x20] sm:$0xf] %v1293
        %1358 = vst [vmem:[%s216 + $0x24] sm:$0xf] %v1294
        %1359 = vst [vmem:[%s216 + $0x28] sm:$0xf] %v1295
        %1360 = vst [vmem:[%s216 + $0x2c] sm:$0xf] %v1296
        %1361 = vst [vmem:[%s216 + $0x30] sm:$0xf] %v1297
        %1362 = vst [vmem:[%s216 + $0x34] sm:$0xf] %v1298
        %1363 = vst [vmem:[%s216 + $0x38] sm:$0xf] %v1299
        %1364 = vst [vmem:[%s216 + $0x3c] sm:$0xf] %v1300
        %1365 = vst [vmem:[%s216 + $0x40] sm:$0xf] %v1301
        %1366 = vst [vmem:[%s216 + $0x44] sm:$0xf] %v1302
        %1367 = vst [vmem:[%s216 + $0x48] sm:$0xf] %v1303
        %1368 = vst [vmem:[%s216 + $0x4c] sm:$0xf] %v1304
        %1369 = vst [vmem:[%s216 + $0x50] sm:$0xf] %v1305
        %1370 = vst [vmem:[%s216 + $0x54] sm:$0xf] %v1306
        %1371 = vst [vmem:[%s216 + $0x58] sm:$0xf] %v1307
        %1372 = vst [vmem:[%s216 + $0x5c] sm:$0xf] %v1308
        %1373 = vst [vmem:[%s216 + $0x60] sm:$0xf] %v1309
        %1374 = vst [vmem:[%s216 + $0x64] sm:$0xf] %v1310
        %1375 = vst [vmem:[%s216 + $0x68] sm:$0xf] %v1311
        %1376 = vst [vmem:[%s216 + $0x6c] sm:$0xf] %v1312
        %1377 = vst [vmem:[%s216 + $0x70] sm:$0xf] %v1313
        %1378 = vst [vmem:[%s216 + $0x74] sm:$0xf] %v1314
        %1379 = vst [vmem:[%s216 + $0x78] sm:$0xf] %v1315
        %1380 = vst [vmem:[%s216 + $0x7c] sm:$0xf] %v1316
        %s1381 = sand.u32 %s97, 1
        %s1382 = scalar_lea.sflag [#allocation4], %s1381
        %s1383 = sand.u32 %s97, 1
        %s1384 = smul.addr %s1383, 128
        %s1385 = scalar_lea.vmem [#allocation8], %s1384
        // Predicated region
        $region45: #{tpu_custom_call.1} parent=31 // pred_check
          %p1386 = pneg %p107
        $region46: #{tpu_custom_call.1} parent=31 // pred_check_branch
          %1388 = sbr.rel (%p1386) target = $region48
        $region47: #{tpu_custom_call.1} parent=31 // pred_region
          %s1389 = smul.u32 32, %s21
          %s1391 = ssub.s32 2048, 2048
          %1392 = vsyncadd %s1382, %s1391
          %s1393 = smul.addr %s1389, 64
          %s1394 = scalar_lea.hbm %s3, %s1393
          %s1395 = sshll.u32 %s1385, 4
          %s1396 = int_to_ptr.vmem [resolvable:$true] %s1395
          %1401 = dma.vmem_to_hbm [thread:$0]  %s1396, 2048, %s1394, %s1382, 64, 64, 4
        $region48: #{tpu_custom_call.1} parent=31 // pred_fallthru
          _
      $region32: #{tpu_custom_call.1} parent=5 // pred_fallthru
        _
      %p1402 = scmp.le.s32.totalorder 2, %s16
      // Predicated region
      $region49: #{tpu_custom_call.1} parent=5 // pred_check
        %p1403 = pneg %p1402
      $region50: #{tpu_custom_call.1} parent=5 // pred_check_branch
        %1405 = sbr.rel (%p1403) target = $region52
      $region51: #{tpu_custom_call.1} parent=5 // pred_region
        %s1406 = ssub.s32 %s16, 2
        // Predicated region
        $region53: #{tpu_custom_call.1} parent=51 // pred_check
          %p1407 = pneg %p113
        $region54: #{tpu_custom_call.1} parent=51 // pred_check_branch
          %1409 = sbr.rel (%p1407) target = $region56
        $region55: #{tpu_custom_call.1} parent=51 // pred_region
          %s1410 = sand.u32 %s98, 1
          %s1411 = scalar_lea.sflag [#allocation4], %s1410
          %s1412 = sand.u32 %s98, 1
          %s1413 = smul.addr %s1412, 128
          %s1414 = scalar_lea.vmem [#allocation8], %s1413
          %1415 = dma.done %s1411, 2048
        $region56: #{tpu_custom_call.1} parent=51 // pred_fallthru
          _
      $region52: #{tpu_custom_call.1} parent=5 // pred_fallthru
        _
    $region6: #{tpu_custom_call.1} parent=1 // loop_footer
      %s20 = sadd.s32 1, %s16
    $region7: #{tpu_custom_call.1} parent=1 // loop_footer_branch
      %15 = sbr.rel target = $region3
    $region8: #{tpu_custom_call.1} parent=1 // loop_exit
      _
    %1416 = vsyncpa [#allocation3], 1
    %s1417 = scalar_lea.sflag [#allocation3], 1
    %1418 = vsyncpa %s1417, 1
    %1419 = vsyncpa [#allocation6], 1
    %1420 = vsyncpa [#allocation4], 1
    %s1421 = scalar_lea.sflag [#allocation4], 1
    %1422 = vsyncpa %s1421, 1

</llo_original>
